<compile_context>
chip_gen: v6e
topology: v6e:2x2x1
jax: 0.10.0
libtpu: 0.0.40
codegen_flags: <defaults>
</compile_context>

<pallas_src>
import functools

import jax
import jax.numpy as jnp
from jax.experimental import pallas as pl
from jax.experimental.pallas import tpu as pltpu


def _round_up(x, m):
    return ((x + m - 1) // m) * m


def _rasterize_sum_kernel(params_ref, featT_ref, coords_ref, out_ref, *, strip_n):
    """One pixel tile of the "sum" rasterizer; gaussian slabs are VMEM-resident.

    params : (N_pad, 8)        f32  resident; per-gaussian scalars
             [:,0]=cx [:,1]=cy [:,2]=-0.5*conic_a [:,3]=-conic_b
             [:,4]=-0.5*conic_c [:,5]=opacity  ([:,6:8] = padding)
    featT  : (Cdim_pad, N_pad) bf16 resident; row index = comp*3 + channel
    coords : (2, tile_p)       f32  row 0 = pixel x, row 1 = pixel y
    out    : (Cdim_pad, tile_p) f32
    """
    px = coords_ref[0:1, :]                       # (1, tile_p)
    py = coords_ref[1:2, :]

    n_pad = params_ref.shape[0]
    n_strips = n_pad // strip_n                   # static

    def body(s, acc):
        start = pl.multiple_of(s * strip_n, strip_n)
        g = params_ref[pl.ds(start, strip_n), :]  # (strip_n, 8)
        cx, cy = g[:, 0:1], g[:, 1:2]
        na, nb, nc = g[:, 2:3], g[:, 3:4], g[:, 4:5]
        op = g[:, 5:6]

        dx = cx - px                              # (strip_n, tile_p)
        dy = cy - py
        # s_q == -sigma (constants pre-negated / pre-halved on host); PSD conic
        # => s_q <= 0 always, so no explicit sign check is needed; padded rows
        # have op == 0 and therefore w == 0.
        s_q = (na * dx) * dx + (nc * dy) * dy + (nb * dx) * dy
        alpha = op * jnp.exp(s_q)                 # exp on the EUP
        w = jnp.minimum(jnp.where(alpha >= (1.0 / 255.0), alpha, 0.0), 0.999)

        f = featT_ref[:, pl.ds(start, strip_n)]   # (Cdim_pad, strip_n) bf16
        # sum_n w[n,p] * feat[c,n]  ==  (Cdim_pad, strip_n) @ (strip_n, tile_p)
        return acc + jnp.dot(f, w.astype(jnp.bfloat16),
                             preferred_element_type=jnp.float32)

    acc0 = jnp.zeros(out_ref.shape, jnp.float32)
    out_ref[...] = jax.lax.fori_loop(0, n_strips, body, acc0)


def _rasterize_chunk(params, featT, coords, *, tile_p, strip_n, Cdim_pad, P_pad):
    N_pad = params.shape[0]
    kernel = functools.partial(_rasterize_sum_kernel, strip_n=strip_n)
    return pl.pallas_call(
        kernel,
        out_shape=jax.ShapeDtypeStruct((Cdim_pad, P_pad), jnp.float32),
        grid=(P_pad // tile_p,),
        in_specs=[
            # constant index maps -> fetched once, resident across pixel tiles
            pl.BlockSpec((N_pad, 8), lambda i: (0, 0)),
            pl.BlockSpec((Cdim_pad, N_pad), lambda i: (0, 0)),
            pl.BlockSpec((2, tile_p), lambda i: (0, i)),
        ],
        out_specs=pl.BlockSpec((Cdim_pad, tile_p), lambda i: (0, i)),
        compiler_params=pltpu.CompilerParams(
            dimension_semantics=("parallel",),      # v7x: 2 TCs split pixel tiles
            vmem_limit_bytes=32 * 1024 * 1024),     # safe on v5e/v6e/v7x
    )(params, featT, coords)


def gaussian_basis_forward(xyz, cholesky, features_dc, opacity, *, H, W,
                           tile_p=512, strip_n=256,
                           slab_budget_bytes=8 * 1024 * 1024):
    """Equivalent of GaussianBasis.forward(render_colors=False).

    Returns (num_comps, 3, H, W) float32.
    tile_p=512 (multiple of 256) and strip_n=256 fit the 32 MiB scoped-VMEM
    budget on v5e/v6e/v7x; on v5e a smaller strip_n (128) can be used if the
    bundle shows the single vector-store slot is binding.
    """
    N = xyz.shape[0]
    num_comps = features_dc.shape[0]
    Cdim = num_comps * 3
    Cdim_pad = _round_up(Cdim, 8)
    P = H * W

    # ---- project_gaussians_2d (per-gaussian glue, plain JAX) --------------
    means = jnp.tanh(xyz)                                    # get_xyz
    cx = 0.5 * W * means[:, 0] + 0.5 * W - 0.5               # ndc -> pixel
    cy = 0.5 * H * means[:, 1] + 0.5 * H - 0.5
    chol = cholesky + jnp.array([[0.5, 0.0, 0.5]], jnp.float32)  # cholesky_bound
    l1, l2, l3 = chol[:, 0], chol[:, 1], chol[:, 2]
    # cov = L L^T with L = [[l1, 0], [l2, l3]];  conic = cov^-1
    a = l1 * l1
    b = l1 * l2
    c = l2 * l2 + l3 * l3
    det = a * c - b * b
    # fold the kernel's 0.5 scale and the exp(-sigma) negation into the conics
    na = -0.5 * c / det          # = -0.5 * conic_a
    nb = b / det                 # = -conic_b
    nc = -0.5 * a / det          # = -0.5 * conic_c
    # TODO(synk): 3-sigma radius culling / tile binning (radii, num_tiles_hit)
    # is skipped; all gaussians are summed with the same alpha >= 1/255 cutoff.

    zeros = jnp.zeros_like(cx)
    params_all = jnp.stack(
        [cx, cy, na, nb, nc, opacity[:, 0].astype(jnp.float32), zeros, zeros],
        axis=1).astype(jnp.float32)                               # (N, 8)

    # features (num_comps, N, 3) -> (Cdim_pad, N), row index = comp*3 + channel
    featT_all = jnp.transpose(features_dc, (0, 2, 1)).reshape(Cdim, N)
    featT_all = jnp.pad(featT_all,
                        ((0, Cdim_pad - Cdim), (0, 0))).astype(jnp.bfloat16)

    # ---- pixel coordinates (streamed per pixel tile; 8 B/pixel) -----------
    # TODO(synk): could be synthesized in-kernel from program_id + iota to drop
    # this input stream entirely (minor).
    tile_p = min(tile_p, _round_up(P, 128))
    P_pad = _round_up(P, tile_p)
    pix = jnp.arange(P, dtype=jnp.int32)
    coords = jnp.stack([(pix % W).astype(jnp.float32),
                        (pix // W).astype(jnp.float32)], axis=0)   # (2, P)
    coords = jnp.pad(coords, ((0, 0), (0, P_pad - P)))

    # ---- chunk gaussians so the resident slabs fit the VMEM budget --------
    # VMEM bytes/gaussian: params row (8 lanes padded to 128) = 512 B f32,
    # featT column (sublanes padded to 16 for bf16) = 2 * roundup(Cdim_pad,16).
    # Budget is conservative (covers a possible 2x pipeline buffer).
    # TODO(synk): a lane-dense (8, N) params layout would cut the params slab
    # to 32 B/gaussian for very large N, at the cost of an in-kernel
    # lane->sublane relayout per strip.
    per_g = 512 + 2 * _round_up(Cdim_pad, 16)
    max_chunk = max(strip_n, (slab_budget_bytes // per_g) // strip_n * strip_n)

    out = None
    for c0 in range(0, N, max_chunk):
        c1 = min(N, c0 + max_chunk)
        n_c = c1 - c0
        strip = min(strip_n, _round_up(n_c, 128))
        n_c_pad = _round_up(n_c, strip)
        p_chunk = jnp.pad(params_all[c0:c1], ((0, n_c_pad - n_c), (0, 0)))
        f_chunk = jnp.pad(featT_all[:, c0:c1], ((0, 0), (0, n_c_pad - n_c)))
        part = _rasterize_chunk(p_chunk, f_chunk, coords,
                                tile_p=tile_p, strip_n=strip,
                                Cdim_pad=Cdim_pad, P_pad=P_pad)
        out = part if out is None else out + part

    # (Cdim_pad, P_pad) -> (num_comps, 3, H, W): slice + pure reshape
    return out[:Cdim, :P].reshape(num_comps, 3, H, W)


if __name__ == "__main__":
    # small, deterministic setup consistent with GaussianBasis.__init__
    N = 64            # init_num_points
    num_comps = 2
    H = W = 16        # image size; BLOCK_H/BLOCK_W tile binning is unused here

    key = jax.random.PRNGKey(0)
    k1, k2, k3 = jax.random.split(key, 3)
    # _xyz = atanh(2*(rand - 0.5)),  _cholesky = rand,  _features_dc = rand
    xyz = jnp.arctanh(2.0 * (jax.random.uniform(k1, (N, 2), jnp.float32) - 0.5))
    cholesky = jax.random.uniform(k2, (N, 3), jnp.float32)
    features_dc = jax.random.uniform(k3, (num_comps, N, 3), jnp.float32)
    opacity = jnp.ones((N, 1), jnp.float32)          # registered buffer of ones

    out = gaussian_basis_forward(xyz, cholesky, features_dc, opacity, H=H, W=W)
    out = jax.block_until_ready(out)
    assert out.shape == (num_comps, 3, H, W), out.shape
    assert out.dtype == jnp.float32
    assert bool(jnp.all(jnp.isfinite(out)))
    print("KERNEL_OK")
</pallas_src>

<mosaic_0001>
module attributes {stable_mosaic.version = 11 : i64} {
  func.func @_rasterize_sum_kernel(%arg0: i32, %arg1: memref<128x8xf32, #tpu.memory_space<vmem>>, %arg2: memref<8x128xbf16, #tpu.memory_space<vmem>>, %arg3: memref<2x256xf32, #tpu.memory_space<vmem>>, %arg4: memref<8x256xf32, #tpu.memory_space<vmem>>) attributes {dimension_semantics = [#tpu.dimension_semantics<parallel>], iteration_bounds = array<i64: 1>, scalar_prefetch = 0 : i64, scratch_operands = 0 : i64, tpu.core_type = #tpu.core_type<tc>, window_params = [{pipeline_mode = #tpu.pipeline_mode<synchronous>, transform_indices = @transform_0, window_bounds = array<i64: 128, 8>}, {pipeline_mode = #tpu.pipeline_mode<synchronous>, transform_indices = @transform_1, window_bounds = array<i64: 8, 128>}, {transform_indices = @transform_2, window_bounds = array<i64: 2, 256>}, {transform_indices = @transform_3, window_bounds = array<i64: 8, 256>}]} {
    %c0 = arith.constant 0 : index
    %c0_0 = arith.constant 0 : index
    %0 = vector.load %arg3[%c0, %c0_0] : memref<2x256xf32, #tpu.memory_space<vmem>>, vector<1x256xf32>
    %c1 = arith.constant 1 : index
    %c0_1 = arith.constant 0 : index
    %1 = vector.load %arg3[%c1, %c0_1] : memref<2x256xf32, #tpu.memory_space<vmem>>, vector<1x256xf32>
    %cst = arith.constant 0.000000e+00 : f32
    %2 = vector.broadcast %cst : f32 to vector<8x256xf32>
    %c0_i32 = arith.constant 0 : i32
    %c128_i32 = arith.constant 128 : i32
    %3 = arith.muli %c0_i32, %c128_i32 : i32
    %4 = tpu.assume_multiple %3, 128 : i32
    %5 = arith.index_cast %4 : i32 to index
    %c0_2 = arith.constant 0 : index
    %6 = vector.load %arg1[%5, %c0_2] : memref<128x8xf32, #tpu.memory_space<vmem>>, vector<128x8xf32>
    %7 = vector.extract_strided_slice %6 {offsets = [0, 0], sizes = [128, 1], strides = [1, 1]} : vector<128x8xf32> to vector<128x1xf32>
    %8 = vector.extract_strided_slice %6 {offsets = [0, 1], sizes = [128, 1], strides = [1, 1]} : vector<128x8xf32> to vector<128x1xf32>
    %9 = vector.extract_strided_slice %6 {offsets = [0, 2], sizes = [128, 1], strides = [1, 1]} : vector<128x8xf32> to vector<128x1xf32>
    %10 = vector.extract_strided_slice %6 {offsets = [0, 3], sizes = [128, 1], strides = [1, 1]} : vector<128x8xf32> to vector<128x1xf32>
    %11 = vector.extract_strided_slice %6 {offsets = [0, 4], sizes = [128, 1], strides = [1, 1]} : vector<128x8xf32> to vector<128x1xf32>
    %12 = vector.extract_strided_slice %6 {offsets = [0, 5], sizes = [128, 1], strides = [1, 1]} : vector<128x8xf32> to vector<128x1xf32>
    %13 = vector.broadcast %7 : vector<128x1xf32> to vector<128x256xf32>
    %14 = vector.broadcast %0 : vector<1x256xf32> to vector<128x256xf32>
    %15 = arith.subf %13, %14 : vector<128x256xf32>
    %16 = vector.broadcast %8 : vector<128x1xf32> to vector<128x256xf32>
    %17 = vector.broadcast %1 : vector<1x256xf32> to vector<128x256xf32>
    %18 = arith.subf %16, %17 : vector<128x256xf32>
    %19 = vector.broadcast %9 : vector<128x1xf32> to vector<128x256xf32>
    %20 = arith.mulf %19, %15 : vector<128x256xf32>
    %21 = arith.mulf %20, %15 : vector<128x256xf32>
    %22 = vector.broadcast %11 : vector<128x1xf32> to vector<128x256xf32>
    %23 = arith.mulf %22, %18 : vector<128x256xf32>
    %24 = arith.mulf %23, %18 : vector<128x256xf32>
    %25 = arith.addf %21, %24 : vector<128x256xf32>
    %26 = vector.broadcast %10 : vector<128x1xf32> to vector<128x256xf32>
    %27 = arith.mulf %26, %15 : vector<128x256xf32>
    %28 = arith.mulf %27, %18 : vector<128x256xf32>
    %29 = arith.addf %25, %28 : vector<128x256xf32>
    %30 = math.exp %29 : vector<128x256xf32>
    %31 = vector.broadcast %12 : vector<128x1xf32> to vector<128x256xf32>
    %32 = arith.mulf %31, %30 : vector<128x256xf32>
    %cst_3 = arith.constant 0.00392156886 : f32
    %33 = vector.broadcast %cst_3 : f32 to vector<128x256xf32>
    %34 = arith.cmpf oge, %32, %33 : vector<128x256xf32>
    %cst_4 = arith.constant 0.000000e+00 : f32
    %35 = vector.broadcast %cst_4 : f32 to vector<128x256xf32>
    %36 = arith.select %34, %32, %35 : vector<128x256xi1>, vector<128x256xf32>
    %cst_5 = arith.constant 9.990000e-01 : f32
    %37 = vector.broadcast %cst_5 : f32 to vector<128x256xf32>
    %38 = arith.minimumf %36, %37 : vector<128x256xf32>
    %c0_6 = arith.constant 0 : index
    %39 = arith.index_cast %4 : i32 to index
    %40 = vector.load %arg2[%c0_6, %39] : memref<8x128xbf16, #tpu.memory_space<vmem>>, vector<8x128xbf16>
    %41 = arith.truncf %38 : vector<128x256xf32> to vector<128x256xbf16>
    %cst_7 = arith.constant dense<0.000000e+00> : vector<8x256xf32>
    %42 = tpu.matmul %40, %41, %cst_7 {dimension_numbers = #tpu.dot_dimension_numbers<[1], [0], [0], [1], [0, 0, 1, 1], [], []>} : vector<8x128xbf16>, vector<128x256xbf16>, vector<8x256xf32> -> vector<8x256xf32>
    %43 = arith.addf %2, %42 : vector<8x256xf32>
    %c1_i32 = arith.constant 1 : i32
    %c0_8 = arith.constant 0 : index
    %c0_9 = arith.constant 0 : index
    %44 = vector.load %arg4[%c0_8, %c0_9] : memref<8x256xf32, #tpu.memory_space<vmem>>, vector<8x256xf32>
    tpu.vector_store %arg4[%c0_8, %c0_9], %43 {strides = array<i32>} : memref<8x256xf32, #tpu.memory_space<vmem>>, vector<8x256xf32>,
    return
  }
  func.func @transform_0(%arg0: i32) -> (i32, i32) {
    %c0_i32 = arith.constant 0 : i32
    %c0_i32_0 = arith.constant 0 : i32
    %c0_i32_1 = arith.constant 0 : i32
    return %c0_i32, %c0_i32_0 : i32, i32
  }
  func.func @transform_1(%arg0: i32) -> (i32, i32) {
    %c0_i32 = arith.constant 0 : i32
    %c0_i32_0 = arith.constant 0 : i32
    %c0_i32_1 = arith.constant 0 : i32
    return %c0_i32, %c0_i32_0 : i32, i32
  }
  func.func @transform_2(%arg0: i32) -> (i32, i32) {
    %c0_i32 = arith.constant 0 : i32
    %c0_i32_0 = arith.constant 0 : i32
    return %c0_i32, %arg0 : i32, i32
  }
  func.func @transform_3(%arg0: i32) -> (i32, i32) {
    %c0_i32 = arith.constant 0 : i32
    %c0_i32_0 = arith.constant 0 : i32
    return %c0_i32, %arg0 : i32, i32
  }
}

</mosaic_0001>

<llo_original>
// kernel: tpu_custom_call.1
$region0: #{tpu_custom_call.1}
  #allocation0 [shape = 'u32[]', space=smem, size = 0x4, offset = 0x4, fixed_abs, tag = 'smem constant byte address 0x4 - core index']
  #allocation1 [shape = 'u32[144,128]{1,0:T(1,128)}', space=vmem, size = 0x12000, scoped, tag = 'internal scratch']
  %s0 = inlined_call_operand.vmem [shape: f32[128,8], index: 0, kind: input, shape index: {}]
  %s1 = inlined_call_operand.vmem [shape: bf16[8,128], index: 1, kind: input, shape index: {}]
  %s2 = inlined_call_operand.vmem [shape: f32[2,256], index: 2, kind: input, shape index: {}]
  %s3 = inlined_call_operand.hbm [shape: f32[8,256], index: 3, kind: output, shape index: {}]
  %s4 = sld [smem:[#allocation0]]
  $region22: #{tpu_custom_call.1} parent=0
    _
  %s6 = ssub.s32 1, %s4
  %s7 = scalar_select 0, %s6, %s4
  $region1: #{tpu_custom_call.1} parent=0
    #allocation2 [shape = 'u8[8192]{0}', space=vmem, size = 0x2000, scoped, tag = 'output window, operand 0, single buffered']
    #allocation3 [shape = 's32[1]{0}', space=sflag, size = 0x4, scoped, tag = 'scoped memory for tpu_custom_call.1']
    %8 = vsyncpa [#allocation3], 0
    // Predicated region
    $region2: #{tpu_custom_call.1} parent=1 // pred_check
      _
    $region3: #{tpu_custom_call.1} parent=1 // pred_check_branch
      %10 = sbr.rel (0) target = $region5
    $region4: #{tpu_custom_call.1} parent=1 // pred_region
      _
    $region5: #{tpu_custom_call.1} parent=1 // pred_fallthru
      _
    // Predicated region
    $region6: #{tpu_custom_call.1} parent=1 // pred_check
      _
    $region7: #{tpu_custom_call.1} parent=1 // pred_check_branch
      %12 = sbr.rel (0) target = $region9
    $region8: #{tpu_custom_call.1} parent=1 // pred_region
      _
    $region9: #{tpu_custom_call.1} parent=1 // pred_fallthru
      _
    // Predicated region
    $region10: #{tpu_custom_call.1} parent=1 // pred_check
      _
    $region11: #{tpu_custom_call.1} parent=1 // pred_check_branch
      %14 = sbr.rel (0) target = $region13
    $region12: #{tpu_custom_call.1} parent=1 // pred_region
      _
    $region13: #{tpu_custom_call.1} parent=1 // pred_fallthru
      _
    %v16 = vld [vmem:[%s2] ss:$2 sm:$0x3]
    %s17 = scalar_lea.vmem %s2, 1
    %v18 = vld [vmem:[%s17] ss:$2 sm:$0x3]
    %v19 = vld [vmem:[%s0] sm:$0xff]
    %v20 = vld [vmem:[%s0 + $0x8] sm:$0xff]
    %v21 = vld [vmem:[%s0 + $0x10] sm:$0xff]
    %v22 = vld [vmem:[%s0 + $0x18] sm:$0xff]
    %v23 = vld [vmem:[%s0 + $0x20] sm:$0xff]
    %v24 = vld [vmem:[%s0 + $0x28] sm:$0xff]
    %v25 = vld [vmem:[%s0 + $0x30] sm:$0xff]
    %v26 = vld [vmem:[%s0 + $0x38] sm:$0xff]
    %v27 = vld [vmem:[%s0 + $0x40] sm:$0xff]
    %v28 = vld [vmem:[%s0 + $0x48] sm:$0xff]
    %v29 = vld [vmem:[%s0 + $0x50] sm:$0xff]
    %v30 = vld [vmem:[%s0 + $0x58] sm:$0xff]
    %v31 = vld [vmem:[%s0 + $0x60] sm:$0xff]
    %v32 = vld [vmem:[%s0 + $0x68] sm:$0xff]
    %v33 = vld [vmem:[%s0 + $0x70] sm:$0xff]
    %v34 = vld [vmem:[%s0 + $0x78] sm:$0xff]
    %36 = vset.pattern.permute.xlu0 0
    %37 = vperm.xlu0 %36, %v19
    %v38 = vpop.permute.xlu0 %37
    %41 = vset.pattern.permute.xlu0 0
    %42 = vperm.xlu0 %41, %v20
    %v43 = vpop.permute.xlu0 %42
    %46 = vset.pattern.permute.xlu0 0
    %47 = vperm.xlu0 %46, %v21
    %v48 = vpop.permute.xlu0 %47
    %51 = vset.pattern.permute.xlu0 0
    %52 = vperm.xlu0 %51, %v22
    %v53 = vpop.permute.xlu0 %52
    %56 = vset.pattern.permute.xlu0 0
    %57 = vperm.xlu0 %56, %v23
    %v58 = vpop.permute.xlu0 %57
    %61 = vset.pattern.permute.xlu0 0
    %62 = vperm.xlu0 %61, %v24
    %v63 = vpop.permute.xlu0 %62
    %66 = vset.pattern.permute.xlu0 0
    %67 = vperm.xlu0 %66, %v25
    %v68 = vpop.permute.xlu0 %67
    %71 = vset.pattern.permute.xlu0 0
    %72 = vperm.xlu0 %71, %v26
    %v73 = vpop.permute.xlu0 %72
    %76 = vset.pattern.permute.xlu0 0
    %77 = vperm.xlu0 %76, %v27
    %v78 = vpop.permute.xlu0 %77
    %81 = vset.pattern.permute.xlu0 0
    %82 = vperm.xlu0 %81, %v28
    %v83 = vpop.permute.xlu0 %82
    %86 = vset.pattern.permute.xlu0 0
    %87 = vperm.xlu0 %86, %v29
    %v88 = vpop.permute.xlu0 %87
    %91 = vset.pattern.permute.xlu0 0
    %92 = vperm.xlu0 %91, %v30
    %v93 = vpop.permute.xlu0 %92
    %96 = vset.pattern.permute.xlu0 0
    %97 = vperm.xlu0 %96, %v31
    %v98 = vpop.permute.xlu0 %97
    %101 = vset.pattern.permute.xlu0 0
    %102 = vperm.xlu0 %101, %v32
    %v103 = vpop.permute.xlu0 %102
    %106 = vset.pattern.permute.xlu0 0
    %107 = vperm.xlu0 %106, %v33
    %v108 = vpop.permute.xlu0 %107
    %111 = vset.pattern.permute.xlu0 0
    %112 = vperm.xlu0 %111, %v34
    %v113 = vpop.permute.xlu0 %112
    %v116 = vlaneseq
    %v117 = vshrl.u32 %v116, 7
    %v118 = vsub.s32 0, %v117
    %v119 = vrot.slane %v16, %v118
    %v120 = vlaneseq
    %v121 = vshrl.u32 %v120, 7
    %v122 = vsub.s32 1, %v121
    %v123 = vrot.slane %v16, %v122
    %v126 = vsub.f32 %v38, %v119
    %v127 = vsub.f32 %v38, %v123
    %v128 = vsub.f32 %v43, %v119
    %v129 = vsub.f32 %v43, %v123
    %v130 = vsub.f32 %v48, %v119
    %v131 = vsub.f32 %v48, %v123
    %v132 = vsub.f32 %v53, %v119
    %v133 = vsub.f32 %v53, %v123
    %v134 = vsub.f32 %v58, %v119
    %v135 = vsub.f32 %v58, %v123
    %v136 = vsub.f32 %v63, %v119
    %v137 = vsub.f32 %v63, %v123
    %v138 = vsub.f32 %v68, %v119
    %v139 = vsub.f32 %v68, %v123
    %v140 = vsub.f32 %v73, %v119
    %v141 = vsub.f32 %v73, %v123
    %v142 = vsub.f32 %v78, %v119
    %v143 = vsub.f32 %v78, %v123
    %v144 = vsub.f32 %v83, %v119
    %v145 = vsub.f32 %v83, %v123
    %v146 = vsub.f32 %v88, %v119
    %v147 = vsub.f32 %v88, %v123
    %v148 = vsub.f32 %v93, %v119
    %v149 = vsub.f32 %v93, %v123
    %v150 = vsub.f32 %v98, %v119
    %v151 = vsub.f32 %v98, %v123
    %v152 = vsub.f32 %v103, %v119
    %v153 = vsub.f32 %v103, %v123
    %v154 = vsub.f32 %v108, %v119
    %v155 = vsub.f32 %v108, %v123
    %v156 = vsub.f32 %v113, %v119
    %v157 = vsub.f32 %v113, %v123
    %158 = vset.pattern.permute.xlu0 1
    %159 = vperm.xlu0 %158, %v19
    %v160 = vpop.permute.xlu0 %159
    %162 = vset.pattern.permute.xlu0 1
    %163 = vperm.xlu0 %162, %v20
    %v164 = vpop.permute.xlu0 %163
    %166 = vset.pattern.permute.xlu0 1
    %167 = vperm.xlu0 %166, %v21
    %v168 = vpop.permute.xlu0 %167
    %170 = vset.pattern.permute.xlu0 1
    %171 = vperm.xlu0 %170, %v22
    %v172 = vpop.permute.xlu0 %171
    %174 = vset.pattern.permute.xlu0 1
    %175 = vperm.xlu0 %174, %v23
    %v176 = vpop.permute.xlu0 %175
    %178 = vset.pattern.permute.xlu0 1
    %179 = vperm.xlu0 %178, %v24
    %v180 = vpop.permute.xlu0 %179
    %182 = vset.pattern.permute.xlu0 1
    %183 = vperm.xlu0 %182, %v25
    %v184 = vpop.permute.xlu0 %183
    %186 = vset.pattern.permute.xlu0 1
    %187 = vperm.xlu0 %186, %v26
    %v188 = vpop.permute.xlu0 %187
    %190 = vset.pattern.permute.xlu0 1
    %191 = vperm.xlu0 %190, %v27
    %v192 = vpop.permute.xlu0 %191
    %194 = vset.pattern.permute.xlu0 1
    %195 = vperm.xlu0 %194, %v28
    %v196 = vpop.permute.xlu0 %195
    %198 = vset.pattern.permute.xlu0 1
    %199 = vperm.xlu0 %198, %v29
    %v200 = vpop.permute.xlu0 %199
    %202 = vset.pattern.permute.xlu0 1
    %203 = vperm.xlu0 %202, %v30
    %v204 = vpop.permute.xlu0 %203
    %206 = vset.pattern.permute.xlu0 1
    %207 = vperm.xlu0 %206, %v31
    %v208 = vpop.permute.xlu0 %207
    %210 = vset.pattern.permute.xlu0 1
    %211 = vperm.xlu0 %210, %v32
    %v212 = vpop.permute.xlu0 %211
    %214 = vset.pattern.permute.xlu0 1
    %215 = vperm.xlu0 %214, %v33
    %v216 = vpop.permute.xlu0 %215
    %218 = vset.pattern.permute.xlu0 1
    %219 = vperm.xlu0 %218, %v34
    %v220 = vpop.permute.xlu0 %219
    %v223 = vlaneseq
    %v224 = vshrl.u32 %v223, 7
    %v225 = vsub.s32 0, %v224
    %v226 = vrot.slane %v18, %v225
    %v227 = vlaneseq
    %v228 = vshrl.u32 %v227, 7
    %v229 = vsub.s32 1, %v228
    %v230 = vrot.slane %v18, %v229
    %v233 = vsub.f32 %v160, %v226
    %v234 = vsub.f32 %v160, %v230
    %v235 = vsub.f32 %v164, %v226
    %v236 = vsub.f32 %v164, %v230
    %v237 = vsub.f32 %v168, %v226
    %v238 = vsub.f32 %v168, %v230
    %v239 = vsub.f32 %v172, %v226
    %v240 = vsub.f32 %v172, %v230
    %v241 = vsub.f32 %v176, %v226
    %v242 = vsub.f32 %v176, %v230
    %v243 = vsub.f32 %v180, %v226
    %v244 = vsub.f32 %v180, %v230
    %v245 = vsub.f32 %v184, %v226
    %v246 = vsub.f32 %v184, %v230
    %v247 = vsub.f32 %v188, %v226
    %v248 = vsub.f32 %v188, %v230
    %v249 = vsub.f32 %v192, %v226
    %v250 = vsub.f32 %v192, %v230
    %v251 = vsub.f32 %v196, %v226
    %v252 = vsub.f32 %v196, %v230
    %v253 = vsub.f32 %v200, %v226
    %v254 = vsub.f32 %v200, %v230
    %v255 = vsub.f32 %v204, %v226
    %v256 = vsub.f32 %v204, %v230
    %v257 = vsub.f32 %v208, %v226
    %v258 = vsub.f32 %v208, %v230
    %v259 = vsub.f32 %v212, %v226
    %v260 = vsub.f32 %v212, %v230
    %v261 = vsub.f32 %v216, %v226
    %v262 = vsub.f32 %v216, %v230
    %v263 = vsub.f32 %v220, %v226
    %v264 = vsub.f32 %v220, %v230
    %265 = vset.pattern.permute.xlu0 2
    %266 = vperm.xlu0 %265, %v19
    %v267 = vpop.permute.xlu0 %266
    %269 = vset.pattern.permute.xlu0 2
    %270 = vperm.xlu0 %269, %v20
    %v271 = vpop.permute.xlu0 %270
    %273 = vset.pattern.permute.xlu0 2
    %274 = vperm.xlu0 %273, %v21
    %v275 = vpop.permute.xlu0 %274
    %277 = vset.pattern.permute.xlu0 2
    %278 = vperm.xlu0 %277, %v22
    %v279 = vpop.permute.xlu0 %278
    %281 = vset.pattern.permute.xlu0 2
    %282 = vperm.xlu0 %281, %v23
    %v283 = vpop.permute.xlu0 %282
    %285 = vset.pattern.permute.xlu0 2
    %286 = vperm.xlu0 %285, %v24
    %v287 = vpop.permute.xlu0 %286
    %289 = vset.pattern.permute.xlu0 2
    %290 = vperm.xlu0 %289, %v25
    %v291 = vpop.permute.xlu0 %290
    %293 = vset.pattern.permute.xlu0 2
    %294 = vperm.xlu0 %293, %v26
    %v295 = vpop.permute.xlu0 %294
    %297 = vset.pattern.permute.xlu0 2
    %298 = vperm.xlu0 %297, %v27
    %v299 = vpop.permute.xlu0 %298
    %301 = vset.pattern.permute.xlu0 2
    %302 = vperm.xlu0 %301, %v28
    %v303 = vpop.permute.xlu0 %302
    %305 = vset.pattern.permute.xlu0 2
    %306 = vperm.xlu0 %305, %v29
    %v307 = vpop.permute.xlu0 %306
    %309 = vset.pattern.permute.xlu0 2
    %310 = vperm.xlu0 %309, %v30
    %v311 = vpop.permute.xlu0 %310
    %313 = vset.pattern.permute.xlu0 2
    %314 = vperm.xlu0 %313, %v31
    %v315 = vpop.permute.xlu0 %314
    %317 = vset.pattern.permute.xlu0 2
    %318 = vperm.xlu0 %317, %v32
    %v319 = vpop.permute.xlu0 %318
    %321 = vset.pattern.permute.xlu0 2
    %322 = vperm.xlu0 %321, %v33
    %v323 = vpop.permute.xlu0 %322
    %325 = vset.pattern.permute.xlu0 2
    %326 = vperm.xlu0 %325, %v34
    %v327 = vpop.permute.xlu0 %326
    %v329 = vmul.f32 %v267, %v126
    %v330 = vmul.f32 %v267, %v127
    %v331 = vmul.f32 %v271, %v128
    %v332 = vmul.f32 %v271, %v129
    %v333 = vmul.f32 %v275, %v130
    %v334 = vmul.f32 %v275, %v131
    %v335 = vmul.f32 %v279, %v132
    %v336 = vmul.f32 %v279, %v133
    %v337 = vmul.f32 %v283, %v134
    %v338 = vmul.f32 %v283, %v135
    %v339 = vmul.f32 %v287, %v136
    %v340 = vmul.f32 %v287, %v137
    %v341 = vmul.f32 %v291, %v138
    %v342 = vmul.f32 %v291, %v139
    %v343 = vmul.f32 %v295, %v140
    %v344 = vmul.f32 %v295, %v141
    %v345 = vmul.f32 %v299, %v142
    %v346 = vmul.f32 %v299, %v143
    %v347 = vmul.f32 %v303, %v144
    %v348 = vmul.f32 %v303, %v145
    %v349 = vmul.f32 %v307, %v146
    %v350 = vmul.f32 %v307, %v147
    %v351 = vmul.f32 %v311, %v148
    %v352 = vmul.f32 %v311, %v149
    %v353 = vmul.f32 %v315, %v150
    %v354 = vmul.f32 %v315, %v151
    %v355 = vmul.f32 %v319, %v152
    %v356 = vmul.f32 %v319, %v153
    %v357 = vmul.f32 %v323, %v154
    %v358 = vmul.f32 %v323, %v155
    %v359 = vmul.f32 %v327, %v156
    %v360 = vmul.f32 %v327, %v157
    %v361 = vmul.f32 %v329, %v126
    %v362 = vmul.f32 %v330, %v127
    %v363 = vmul.f32 %v331, %v128
    %v364 = vmul.f32 %v332, %v129
    %v365 = vmul.f32 %v333, %v130
    %v366 = vmul.f32 %v334, %v131
    %v367 = vmul.f32 %v335, %v132
    %v368 = vmul.f32 %v336, %v133
    %v369 = vmul.f32 %v337, %v134
    %v370 = vmul.f32 %v338, %v135
    %v371 = vmul.f32 %v339, %v136
    %v372 = vmul.f32 %v340, %v137
    %v373 = vmul.f32 %v341, %v138
    %v374 = vmul.f32 %v342, %v139
    %v375 = vmul.f32 %v343, %v140
    %v376 = vmul.f32 %v344, %v141
    %v377 = vmul.f32 %v345, %v142
    %v378 = vmul.f32 %v346, %v143
    %v379 = vmul.f32 %v347, %v144
    %v380 = vmul.f32 %v348, %v145
    %v381 = vmul.f32 %v349, %v146
    %v382 = vmul.f32 %v350, %v147
    %v383 = vmul.f32 %v351, %v148
    %v384 = vmul.f32 %v352, %v149
    %v385 = vmul.f32 %v353, %v150
    %v386 = vmul.f32 %v354, %v151
    %v387 = vmul.f32 %v355, %v152
    %v388 = vmul.f32 %v356, %v153
    %v389 = vmul.f32 %v357, %v154
    %v390 = vmul.f32 %v358, %v155
    %v391 = vmul.f32 %v359, %v156
    %v392 = vmul.f32 %v360, %v157
    %393 = vset.pattern.permute.xlu0 4
    %394 = vperm.xlu0 %393, %v19
    %v395 = vpop.permute.xlu0 %394
    %397 = vset.pattern.permute.xlu0 4
    %398 = vperm.xlu0 %397, %v20
    %v399 = vpop.permute.xlu0 %398
    %401 = vset.pattern.permute.xlu0 4
    %402 = vperm.xlu0 %401, %v21
    %v403 = vpop.permute.xlu0 %402
    %405 = vset.pattern.permute.xlu0 4
    %406 = vperm.xlu0 %405, %v22
    %v407 = vpop.permute.xlu0 %406
    %409 = vset.pattern.permute.xlu0 4
    %410 = vperm.xlu0 %409, %v23
    %v411 = vpop.permute.xlu0 %410
    %413 = vset.pattern.permute.xlu0 4
    %414 = vperm.xlu0 %413, %v24
    %v415 = vpop.permute.xlu0 %414
    %417 = vset.pattern.permute.xlu0 4
    %418 = vperm.xlu0 %417, %v25
    %v419 = vpop.permute.xlu0 %418
    %421 = vset.pattern.permute.xlu0 4
    %422 = vperm.xlu0 %421, %v26
    %v423 = vpop.permute.xlu0 %422
    %425 = vset.pattern.permute.xlu0 4
    %426 = vperm.xlu0 %425, %v27
    %v427 = vpop.permute.xlu0 %426
    %429 = vset.pattern.permute.xlu0 4
    %430 = vperm.xlu0 %429, %v28
    %v431 = vpop.permute.xlu0 %430
    %433 = vset.pattern.permute.xlu0 4
    %434 = vperm.xlu0 %433, %v29
    %v435 = vpop.permute.xlu0 %434
    %437 = vset.pattern.permute.xlu0 4
    %438 = vperm.xlu0 %437, %v30
    %v439 = vpop.permute.xlu0 %438
    %441 = vset.pattern.permute.xlu0 4
    %442 = vperm.xlu0 %441, %v31
    %v443 = vpop.permute.xlu0 %442
    %445 = vset.pattern.permute.xlu0 4
    %446 = vperm.xlu0 %445, %v32
    %v447 = vpop.permute.xlu0 %446
    %449 = vset.pattern.permute.xlu0 4
    %450 = vperm.xlu0 %449, %v33
    %v451 = vpop.permute.xlu0 %450
    %453 = vset.pattern.permute.xlu0 4
    %454 = vperm.xlu0 %453, %v34
    %v455 = vpop.permute.xlu0 %454
    %v457 = vmul.f32 %v395, %v233
    %v458 = vmul.f32 %v395, %v234
    %v459 = vmul.f32 %v399, %v235
    %v460 = vmul.f32 %v399, %v236
    %v461 = vmul.f32 %v403, %v237
    %v462 = vmul.f32 %v403, %v238
    %v463 = vmul.f32 %v407, %v239
    %v464 = vmul.f32 %v407, %v240
    %v465 = vmul.f32 %v411, %v241
    %v466 = vmul.f32 %v411, %v242
    %v467 = vmul.f32 %v415, %v243
    %v468 = vmul.f32 %v415, %v244
    %v469 = vmul.f32 %v419, %v245
    %v470 = vmul.f32 %v419, %v246
    %v471 = vmul.f32 %v423, %v247
    %v472 = vmul.f32 %v423, %v248
    %v473 = vmul.f32 %v427, %v249
    %v474 = vmul.f32 %v427, %v250
    %v475 = vmul.f32 %v431, %v251
    %v476 = vmul.f32 %v431, %v252
    %v477 = vmul.f32 %v435, %v253
    %v478 = vmul.f32 %v435, %v254
    %v479 = vmul.f32 %v439, %v255
    %v480 = vmul.f32 %v439, %v256
    %v481 = vmul.f32 %v443, %v257
    %v482 = vmul.f32 %v443, %v258
    %v483 = vmul.f32 %v447, %v259
    %v484 = vmul.f32 %v447, %v260
    %v485 = vmul.f32 %v451, %v261
    %v486 = vmul.f32 %v451, %v262
    %v487 = vmul.f32 %v455, %v263
    %v488 = vmul.f32 %v455, %v264
    %v489 = vmul.f32 %v457, %v233
    %v490 = vmul.f32 %v458, %v234
    %v491 = vmul.f32 %v459, %v235
    %v492 = vmul.f32 %v460, %v236
    %v493 = vmul.f32 %v461, %v237
    %v494 = vmul.f32 %v462, %v238
    %v495 = vmul.f32 %v463, %v239
    %v496 = vmul.f32 %v464, %v240
    %v497 = vmul.f32 %v465, %v241
    %v498 = vmul.f32 %v466, %v242
    %v499 = vmul.f32 %v467, %v243
    %v500 = vmul.f32 %v468, %v244
    %v501 = vmul.f32 %v469, %v245
    %v502 = vmul.f32 %v470, %v246
    %v503 = vmul.f32 %v471, %v247
    %v504 = vmul.f32 %v472, %v248
    %v505 = vmul.f32 %v473, %v249
    %v506 = vmul.f32 %v474, %v250
    %v507 = vmul.f32 %v475, %v251
    %v508 = vmul.f32 %v476, %v252
    %v509 = vmul.f32 %v477, %v253
    %v510 = vmul.f32 %v478, %v254
    %v511 = vmul.f32 %v479, %v255
    %v512 = vmul.f32 %v480, %v256
    %v513 = vmul.f32 %v481, %v257
    %v514 = vmul.f32 %v482, %v258
    %v515 = vmul.f32 %v483, %v259
    %v516 = vmul.f32 %v484, %v260
    %v517 = vmul.f32 %v485, %v261
    %v518 = vmul.f32 %v486, %v262
    %v519 = vmul.f32 %v487, %v263
    %v520 = vmul.f32 %v488, %v264
    %v521 = vadd.f32 %v361, %v489
    %v522 = vadd.f32 %v362, %v490
    %v523 = vadd.f32 %v363, %v491
    %v524 = vadd.f32 %v364, %v492
    %v525 = vadd.f32 %v365, %v493
    %v526 = vadd.f32 %v366, %v494
    %v527 = vadd.f32 %v367, %v495
    %v528 = vadd.f32 %v368, %v496
    %v529 = vadd.f32 %v369, %v497
    %v530 = vadd.f32 %v370, %v498
    %v531 = vadd.f32 %v371, %v499
    %v532 = vadd.f32 %v372, %v500
    %v533 = vadd.f32 %v373, %v501
    %v534 = vadd.f32 %v374, %v502
    %v535 = vadd.f32 %v375, %v503
    %v536 = vadd.f32 %v376, %v504
    %v537 = vadd.f32 %v377, %v505
    %v538 = vadd.f32 %v378, %v506
    %v539 = vadd.f32 %v379, %v507
    %v540 = vadd.f32 %v380, %v508
    %v541 = vadd.f32 %v381, %v509
    %v542 = vadd.f32 %v382, %v510
    %v543 = vadd.f32 %v383, %v511
    %v544 = vadd.f32 %v384, %v512
    %v545 = vadd.f32 %v385, %v513
    %v546 = vadd.f32 %v386, %v514
    %v547 = vadd.f32 %v387, %v515
    %v548 = vadd.f32 %v388, %v516
    %v549 = vadd.f32 %v389, %v517
    %v550 = vadd.f32 %v390, %v518
    %v551 = vadd.f32 %v391, %v519
    %v552 = vadd.f32 %v392, %v520
    %553 = vset.pattern.permute.xlu0 3
    %554 = vperm.xlu0 %553, %v19
    %v555 = vpop.permute.xlu0 %554
    %557 = vset.pattern.permute.xlu0 3
    %558 = vperm.xlu0 %557, %v20
    %v559 = vpop.permute.xlu0 %558
    %561 = vset.pattern.permute.xlu0 3
    %562 = vperm.xlu0 %561, %v21
    %v563 = vpop.permute.xlu0 %562
    %565 = vset.pattern.permute.xlu0 3
    %566 = vperm.xlu0 %565, %v22
    %v567 = vpop.permute.xlu0 %566
    %569 = vset.pattern.permute.xlu0 3
    %570 = vperm.xlu0 %569, %v23
    %v571 = vpop.permute.xlu0 %570
    %573 = vset.pattern.permute.xlu0 3
    %574 = vperm.xlu0 %573, %v24
    %v575 = vpop.permute.xlu0 %574
    %577 = vset.pattern.permute.xlu0 3
    %578 = vperm.xlu0 %577, %v25
    %v579 = vpop.permute.xlu0 %578
    %581 = vset.pattern.permute.xlu0 3
    %582 = vperm.xlu0 %581, %v26
    %v583 = vpop.permute.xlu0 %582
    %585 = vset.pattern.permute.xlu0 3
    %586 = vperm.xlu0 %585, %v27
    %v587 = vpop.permute.xlu0 %586
    %589 = vset.pattern.permute.xlu0 3
    %590 = vperm.xlu0 %589, %v28
    %v591 = vpop.permute.xlu0 %590
    %593 = vset.pattern.permute.xlu0 3
    %594 = vperm.xlu0 %593, %v29
    %v595 = vpop.permute.xlu0 %594
    %597 = vset.pattern.permute.xlu0 3
    %598 = vperm.xlu0 %597, %v30
    %v599 = vpop.permute.xlu0 %598
    %601 = vset.pattern.permute.xlu0 3
    %602 = vperm.xlu0 %601, %v31
    %v603 = vpop.permute.xlu0 %602
    %605 = vset.pattern.permute.xlu0 3
    %606 = vperm.xlu0 %605, %v32
    %v607 = vpop.permute.xlu0 %606
    %609 = vset.pattern.permute.xlu0 3
    %610 = vperm.xlu0 %609, %v33
    %v611 = vpop.permute.xlu0 %610
    %613 = vset.pattern.permute.xlu0 3
    %614 = vperm.xlu0 %613, %v34
    %v615 = vpop.permute.xlu0 %614
    %v617 = vmul.f32 %v555, %v126
    %v618 = vmul.f32 %v555, %v127
    %v619 = vmul.f32 %v559, %v128
    %v620 = vmul.f32 %v559, %v129
    %v621 = vmul.f32 %v563, %v130
    %v622 = vmul.f32 %v563, %v131
    %v623 = vmul.f32 %v567, %v132
    %v624 = vmul.f32 %v567, %v133
    %v625 = vmul.f32 %v571, %v134
    %v626 = vmul.f32 %v571, %v135
    %v627 = vmul.f32 %v575, %v136
    %v628 = vmul.f32 %v575, %v137
    %v629 = vmul.f32 %v579, %v138
    %v630 = vmul.f32 %v579, %v139
    %v631 = vmul.f32 %v583, %v140
    %v632 = vmul.f32 %v583, %v141
    %v633 = vmul.f32 %v587, %v142
    %v634 = vmul.f32 %v587, %v143
    %v635 = vmul.f32 %v591, %v144
    %v636 = vmul.f32 %v591, %v145
    %v637 = vmul.f32 %v595, %v146
    %v638 = vmul.f32 %v595, %v147
    %v639 = vmul.f32 %v599, %v148
    %v640 = vmul.f32 %v599, %v149
    %v641 = vmul.f32 %v603, %v150
    %v642 = vmul.f32 %v603, %v151
    %v643 = vmul.f32 %v607, %v152
    %v644 = vmul.f32 %v607, %v153
    %v645 = vmul.f32 %v611, %v154
    %v646 = vmul.f32 %v611, %v155
    %v647 = vmul.f32 %v615, %v156
    %v648 = vmul.f32 %v615, %v157
    %v649 = vmul.f32 %v617, %v233
    %v650 = vmul.f32 %v618, %v234
    %v651 = vmul.f32 %v619, %v235
    %v652 = vmul.f32 %v620, %v236
    %v653 = vmul.f32 %v621, %v237
    %v654 = vmul.f32 %v622, %v238
    %v655 = vmul.f32 %v623, %v239
    %v656 = vmul.f32 %v624, %v240
    %v657 = vmul.f32 %v625, %v241
    %v658 = vmul.f32 %v626, %v242
    %v659 = vmul.f32 %v627, %v243
    %v660 = vmul.f32 %v628, %v244
    %v661 = vmul.f32 %v629, %v245
    %v662 = vmul.f32 %v630, %v246
    %v663 = vmul.f32 %v631, %v247
    %v664 = vmul.f32 %v632, %v248
    %v665 = vmul.f32 %v633, %v249
    %v666 = vmul.f32 %v634, %v250
    %v667 = vmul.f32 %v635, %v251
    %v668 = vmul.f32 %v636, %v252
    %v669 = vmul.f32 %v637, %v253
    %v670 = vmul.f32 %v638, %v254
    %v671 = vmul.f32 %v639, %v255
    %v672 = vmul.f32 %v640, %v256
    %v673 = vmul.f32 %v641, %v257
    %v674 = vmul.f32 %v642, %v258
    %v675 = vmul.f32 %v643, %v259
    %v676 = vmul.f32 %v644, %v260
    %v677 = vmul.f32 %v645, %v261
    %v678 = vmul.f32 %v646, %v262
    %v679 = vmul.f32 %v647, %v263
    %v680 = vmul.f32 %v648, %v264
    %v681 = vadd.f32 %v521, %v649
    %v682 = vadd.f32 %v522, %v650
    %v683 = vadd.f32 %v523, %v651
    %v684 = vadd.f32 %v524, %v652
    %v685 = vadd.f32 %v525, %v653
    %v686 = vadd.f32 %v526, %v654
    %v687 = vadd.f32 %v527, %v655
    %v688 = vadd.f32 %v528, %v656
    %v689 = vadd.f32 %v529, %v657
    %v690 = vadd.f32 %v530, %v658
    %v691 = vadd.f32 %v531, %v659
    %v692 = vadd.f32 %v532, %v660
    %v693 = vadd.f32 %v533, %v661
    %v694 = vadd.f32 %v534, %v662
    %v695 = vadd.f32 %v535, %v663
    %v696 = vadd.f32 %v536, %v664
    %v697 = vadd.f32 %v537, %v665
    %v698 = vadd.f32 %v538, %v666
    %v699 = vadd.f32 %v539, %v667
    %v700 = vadd.f32 %v540, %v668
    %v701 = vadd.f32 %v541, %v669
    %v702 = vadd.f32 %v542, %v670
    %v703 = vadd.f32 %v543, %v671
    %v704 = vadd.f32 %v544, %v672
    %v705 = vadd.f32 %v545, %v673
    %v706 = vadd.f32 %v546, %v674
    %v707 = vadd.f32 %v547, %v675
    %v708 = vadd.f32 %v548, %v676
    %v709 = vadd.f32 %v549, %v677
    %v710 = vadd.f32 %v550, %v678
    %v711 = vadd.f32 %v551, %v679
    %v712 = vadd.f32 %v552, %v680
    %v713 = vmul.f32 %v681, 1.442695
    %v714 = vpow.pop %v713
    %v715 = vmul.f32 %v682, 1.442695
    %v716 = vpow.pop %v715
    %v717 = vmul.f32 %v683, 1.442695
    %v718 = vpow.pop %v717
    %v719 = vmul.f32 %v684, 1.442695
    %v720 = vpow.pop %v719
    %v721 = vmul.f32 %v685, 1.442695
    %v722 = vpow.pop %v721
    %v723 = vmul.f32 %v686, 1.442695
    %v724 = vpow.pop %v723
    %v725 = vmul.f32 %v687, 1.442695
    %v726 = vpow.pop %v725
    %v727 = vmul.f32 %v688, 1.442695
    %v728 = vpow.pop %v727
    %v729 = vmul.f32 %v689, 1.442695
    %v730 = vpow.pop %v729
    %v731 = vmul.f32 %v690, 1.442695
    %v732 = vpow.pop %v731
    %v733 = vmul.f32 %v691, 1.442695
    %v734 = vpow.pop %v733
    %v735 = vmul.f32 %v692, 1.442695
    %v736 = vpow.pop %v735
    %v737 = vmul.f32 %v693, 1.442695
    %v738 = vpow.pop %v737
    %v739 = vmul.f32 %v694, 1.442695
    %v740 = vpow.pop %v739
    %v741 = vmul.f32 %v695, 1.442695
    %v742 = vpow.pop %v741
    %v743 = vmul.f32 %v696, 1.442695
    %v744 = vpow.pop %v743
    %v745 = vmul.f32 %v697, 1.442695
    %v746 = vpow.pop %v745
    %v747 = vmul.f32 %v698, 1.442695
    %v748 = vpow.pop %v747
    %v749 = vmul.f32 %v699, 1.442695
    %v750 = vpow.pop %v749
    %v751 = vmul.f32 %v700, 1.442695
    %v752 = vpow.pop %v751
    %v753 = vmul.f32 %v701, 1.442695
    %v754 = vpow.pop %v753
    %v755 = vmul.f32 %v702, 1.442695
    %v756 = vpow.pop %v755
    %v757 = vmul.f32 %v703, 1.442695
    %v758 = vpow.pop %v757
    %v759 = vmul.f32 %v704, 1.442695
    %v760 = vpow.pop %v759
    %v761 = vmul.f32 %v705, 1.442695
    %v762 = vpow.pop %v761
    %v763 = vmul.f32 %v706, 1.442695
    %v764 = vpow.pop %v763
    %v765 = vmul.f32 %v707, 1.442695
    %v766 = vpow.pop %v765
    %v767 = vmul.f32 %v708, 1.442695
    %v768 = vpow.pop %v767
    %v769 = vmul.f32 %v709, 1.442695
    %v770 = vpow.pop %v769
    %v771 = vmul.f32 %v710, 1.442695
    %v772 = vpow.pop %v771
    %v773 = vmul.f32 %v711, 1.442695
    %v774 = vpow.pop %v773
    %v775 = vmul.f32 %v712, 1.442695
    %v776 = vpow.pop %v775
    %777 = vset.pattern.permute.xlu0 5
    %778 = vperm.xlu0 %777, %v19
    %v779 = vpop.permute.xlu0 %778
    %781 = vset.pattern.permute.xlu0 5
    %782 = vperm.xlu0 %781, %v20
    %v783 = vpop.permute.xlu0 %782
    %785 = vset.pattern.permute.xlu0 5
    %786 = vperm.xlu0 %785, %v21
    %v787 = vpop.permute.xlu0 %786
    %789 = vset.pattern.permute.xlu0 5
    %790 = vperm.xlu0 %789, %v22
    %v791 = vpop.permute.xlu0 %790
    %793 = vset.pattern.permute.xlu0 5
    %794 = vperm.xlu0 %793, %v23
    %v795 = vpop.permute.xlu0 %794
    %797 = vset.pattern.permute.xlu0 5
    %798 = vperm.xlu0 %797, %v24
    %v799 = vpop.permute.xlu0 %798
    %801 = vset.pattern.permute.xlu0 5
    %802 = vperm.xlu0 %801, %v25
    %v803 = vpop.permute.xlu0 %802
    %805 = vset.pattern.permute.xlu0 5
    %806 = vperm.xlu0 %805, %v26
    %v807 = vpop.permute.xlu0 %806
    %809 = vset.pattern.permute.xlu0 5
    %810 = vperm.xlu0 %809, %v27
    %v811 = vpop.permute.xlu0 %810
    %813 = vset.pattern.permute.xlu0 5
    %814 = vperm.xlu0 %813, %v28
    %v815 = vpop.permute.xlu0 %814
    %817 = vset.pattern.permute.xlu0 5
    %818 = vperm.xlu0 %817, %v29
    %v819 = vpop.permute.xlu0 %818
    %821 = vset.pattern.permute.xlu0 5
    %822 = vperm.xlu0 %821, %v30
    %v823 = vpop.permute.xlu0 %822
    %825 = vset.pattern.permute.xlu0 5
    %826 = vperm.xlu0 %825, %v31
    %v827 = vpop.permute.xlu0 %826
    %829 = vset.pattern.permute.xlu0 5
    %830 = vperm.xlu0 %829, %v32
    %v831 = vpop.permute.xlu0 %830
    %833 = vset.pattern.permute.xlu0 5
    %834 = vperm.xlu0 %833, %v33
    %v835 = vpop.permute.xlu0 %834
    %837 = vset.pattern.permute.xlu0 5
    %838 = vperm.xlu0 %837, %v34
    %v839 = vpop.permute.xlu0 %838
    %v841 = vmul.f32 %v779, %v714
    %v842 = vmul.f32 %v779, %v716
    %v843 = vmul.f32 %v783, %v718
    %v844 = vmul.f32 %v783, %v720
    %v845 = vmul.f32 %v787, %v722
    %v846 = vmul.f32 %v787, %v724
    %v847 = vmul.f32 %v791, %v726
    %v848 = vmul.f32 %v791, %v728
    %v849 = vmul.f32 %v795, %v730
    %v850 = vmul.f32 %v795, %v732
    %v851 = vmul.f32 %v799, %v734
    %v852 = vmul.f32 %v799, %v736
    %v853 = vmul.f32 %v803, %v738
    %v854 = vmul.f32 %v803, %v740
    %v855 = vmul.f32 %v807, %v742
    %v856 = vmul.f32 %v807, %v744
    %v857 = vmul.f32 %v811, %v746
    %v858 = vmul.f32 %v811, %v748
    %v859 = vmul.f32 %v815, %v750
    %v860 = vmul.f32 %v815, %v752
    %v861 = vmul.f32 %v819, %v754
    %v862 = vmul.f32 %v819, %v756
    %v863 = vmul.f32 %v823, %v758
    %v864 = vmul.f32 %v823, %v760
    %v865 = vmul.f32 %v827, %v762
    %v866 = vmul.f32 %v827, %v764
    %v867 = vmul.f32 %v831, %v766
    %v868 = vmul.f32 %v831, %v768
    %v869 = vmul.f32 %v835, %v770
    %v870 = vmul.f32 %v835, %v772
    %v871 = vmul.f32 %v839, %v774
    %v872 = vmul.f32 %v839, %v776
    %vm873 = vcmp.ge.f32.partialorder %v841, 0.003921569
    %vm874 = vcmp.ge.f32.partialorder %v842, 0.003921569
    %vm875 = vcmp.ge.f32.partialorder %v843, 0.003921569
    %vm876 = vcmp.ge.f32.partialorder %v844, 0.003921569
    %vm877 = vcmp.ge.f32.partialorder %v845, 0.003921569
    %vm878 = vcmp.ge.f32.partialorder %v846, 0.003921569
    %vm879 = vcmp.ge.f32.partialorder %v847, 0.003921569
    %vm880 = vcmp.ge.f32.partialorder %v848, 0.003921569
    %vm881 = vcmp.ge.f32.partialorder %v849, 0.003921569
    %vm882 = vcmp.ge.f32.partialorder %v850, 0.003921569
    %vm883 = vcmp.ge.f32.partialorder %v851, 0.003921569
    %vm884 = vcmp.ge.f32.partialorder %v852, 0.003921569
    %vm885 = vcmp.ge.f32.partialorder %v853, 0.003921569
    %vm886 = vcmp.ge.f32.partialorder %v854, 0.003921569
    %vm887 = vcmp.ge.f32.partialorder %v855, 0.003921569
    %vm888 = vcmp.ge.f32.partialorder %v856, 0.003921569
    %vm889 = vcmp.ge.f32.partialorder %v857, 0.003921569
    %vm890 = vcmp.ge.f32.partialorder %v858, 0.003921569
    %vm891 = vcmp.ge.f32.partialorder %v859, 0.003921569
    %vm892 = vcmp.ge.f32.partialorder %v860, 0.003921569
    %vm893 = vcmp.ge.f32.partialorder %v861, 0.003921569
    %vm894 = vcmp.ge.f32.partialorder %v862, 0.003921569
    %vm895 = vcmp.ge.f32.partialorder %v863, 0.003921569
    %vm896 = vcmp.ge.f32.partialorder %v864, 0.003921569
    %vm897 = vcmp.ge.f32.partialorder %v865, 0.003921569
    %vm898 = vcmp.ge.f32.partialorder %v866, 0.003921569
    %vm899 = vcmp.ge.f32.partialorder %v867, 0.003921569
    %vm900 = vcmp.ge.f32.partialorder %v868, 0.003921569
    %vm901 = vcmp.ge.f32.partialorder %v869, 0.003921569
    %vm902 = vcmp.ge.f32.partialorder %v870, 0.003921569
    %vm903 = vcmp.ge.f32.partialorder %v871, 0.003921569
    %vm904 = vcmp.ge.f32.partialorder %v872, 0.003921569
    %v905 = vsel %vm873, %v841, 0.0
    %v906 = vsel %vm874, %v842, 0.0
    %v907 = vsel %vm875, %v843, 0.0
    %v908 = vsel %vm876, %v844, 0.0
    %v909 = vsel %vm877, %v845, 0.0
    %v910 = vsel %vm878, %v846, 0.0
    %v911 = vsel %vm879, %v847, 0.0
    %v912 = vsel %vm880, %v848, 0.0
    %v913 = vsel %vm881, %v849, 0.0
    %v914 = vsel %vm882, %v850, 0.0
    %v915 = vsel %vm883, %v851, 0.0
    %v916 = vsel %vm884, %v852, 0.0
    %v917 = vsel %vm885, %v853, 0.0
    %v918 = vsel %vm886, %v854, 0.0
    %v919 = vsel %vm887, %v855, 0.0
    %v920 = vsel %vm888, %v856, 0.0
    %v921 = vsel %vm889, %v857, 0.0
    %v922 = vsel %vm890, %v858, 0.0
    %v923 = vsel %vm891, %v859, 0.0
    %v924 = vsel %vm892, %v860, 0.0
    %v925 = vsel %vm893, %v861, 0.0
    %v926 = vsel %vm894, %v862, 0.0
    %v927 = vsel %vm895, %v863, 0.0
    %v928 = vsel %vm896, %v864, 0.0
    %v929 = vsel %vm897, %v865, 0.0
    %v930 = vsel %vm898, %v866, 0.0
    %v931 = vsel %vm899, %v867, 0.0
    %v932 = vsel %vm900, %v868, 0.0
    %v933 = vsel %vm901, %v869, 0.0
    %v934 = vsel %vm902, %v870, 0.0
    %v935 = vsel %vm903, %v871, 0.0
    %v936 = vsel %vm904, %v872, 0.0
    %v937 = vmin.f32 %v905, 0.999
    %v938 = vmin.f32 %v906, 0.999
    %v939 = vmin.f32 %v907, 0.999
    %v940 = vmin.f32 %v908, 0.999
    %v941 = vmin.f32 %v909, 0.999
    %v942 = vmin.f32 %v910, 0.999
    %v943 = vmin.f32 %v911, 0.999
    %v944 = vmin.f32 %v912, 0.999
    %v945 = vmin.f32 %v913, 0.999
    %v946 = vmin.f32 %v914, 0.999
    %v947 = vmin.f32 %v915, 0.999
    %v948 = vmin.f32 %v916, 0.999
    %v949 = vmin.f32 %v917, 0.999
    %v950 = vmin.f32 %v918, 0.999
    %v951 = vmin.f32 %v919, 0.999
    %v952 = vmin.f32 %v920, 0.999
    %v953 = vmin.f32 %v921, 0.999
    %v954 = vmin.f32 %v922, 0.999
    %v955 = vmin.f32 %v923, 0.999
    %v956 = vmin.f32 %v924, 0.999
    %v957 = vmin.f32 %v925, 0.999
    %v958 = vmin.f32 %v926, 0.999
    %v959 = vmin.f32 %v927, 0.999
    %v960 = vmin.f32 %v928, 0.999
    %v961 = vmin.f32 %v929, 0.999
    %v962 = vmin.f32 %v930, 0.999
    %v963 = vmin.f32 %v931, 0.999
    %v964 = vmin.f32 %v932, 0.999
    %v965 = vmin.f32 %v933, 0.999
    %v966 = vmin.f32 %v934, 0.999
    %v967 = vmin.f32 %v935, 0.999
    %v968 = vmin.f32 %v936, 0.999
    %v969 = vld [vmem:[%s1] sm:$0xf]
    %v970 = vpack.c.bf16 %v939, %v937
    %v971 = vpack.c.bf16 %v940, %v938
    %v972 = vpack.c.bf16 %v943, %v941
    %v973 = vpack.c.bf16 %v944, %v942
    %v974 = vpack.c.bf16 %v947, %v945
    %v975 = vpack.c.bf16 %v948, %v946
    %v976 = vpack.c.bf16 %v951, %v949
    %v977 = vpack.c.bf16 %v952, %v950
    %v978 = vpack.c.bf16 %v955, %v953
    %v979 = vpack.c.bf16 %v956, %v954
    %v980 = vpack.c.bf16 %v959, %v957
    %v981 = vpack.c.bf16 %v960, %v958
    %v982 = vpack.c.bf16 %v963, %v961
    %v983 = vpack.c.bf16 %v964, %v962
    %v984 = vpack.c.bf16 %v967, %v965
    %v985 = vpack.c.bf16 %v968, %v966
    %986 = vmatprep.subr.bf16.mxu0 %v985
    %987 = vmatpush1.bf16.msra.mxu0 %v984
    %988 = vmatprep.subr.bf16.mxu0 %v983
    %989 = vmatpush1.bf16.msra.mxu0 %v982
    %990 = vmatprep.subr.bf16.mxu0 %v981
    %991 = vmatpush1.bf16.msra.mxu0 %v980
    %992 = vmatprep.subr.bf16.mxu0 %v979
    %993 = vmatpush1.bf16.msra.mxu0 %v978
    %994 = vmatprep.subr.bf16.mxu0 %v977
    %995 = vmatpush1.bf16.msra.mxu0 %v976
    %996 = vmatprep.subr.bf16.mxu0 %v975
    %997 = vmatpush1.bf16.msra.mxu0 %v974
    %998 = vmatprep.subr.bf16.mxu0 %v973
    %999 = vmatpush1.bf16.msra.mxu0 %v972
    %1000 = vmatprep.subr.bf16.mxu0 %v971
    %1001 = vmatpush1.bf16.msra.mxu0 %v970
    %1002 = vmatprep.subr.bf16.mxu0 0
    %1003 = vmatpush2.bf16.msra.mxu0 0
    %1004 = vmatprep.subr.bf16.mxu0 0
    %1005 = vmatpush2.bf16.msra.mxu0 0
    %1006 = vmatprep.subr.bf16.mxu0 0
    %1007 = vmatpush2.bf16.msra.mxu0 0
    %1008 = vmatprep.subr.bf16.mxu0 0
    %1009 = vmatpush2.bf16.msra.mxu0 0
    %1010 = vmatprep.subr.bf16.mxu0 0
    %1011 = vmatpush2.bf16.msra.mxu0 0
    %1012 = vmatprep.subr.bf16.mxu0 0
    %1013 = vmatpush2.bf16.msra.mxu0 0
    %1014 = vmatprep.subr.bf16.mxu0 0
    %1015 = vmatpush2.bf16.msra.mxu0 0
    %1016 = vmatprep.subr.bf16.mxu0 0
    %1017 = vmatpush2.bf16.msra.mxu0 0
    %1018 = vmatprep.mubr.bf16.mxu0 0
    %1019 = vmatmul.mubr.bf16.gmra.mxu0 %v969
    %v1020 = vpop.f32.mrf.mxu0
    %v1021 = vadd.f32 0.0, %v1020
    %v1022 = vpop.f32.mrf.mxu0
    %v1023 = vadd.f32 0.0, %v1022
    %v1024 = vpop.f32.mrf.mxu0
    %v1025 = vpop.f32.mrf.mxu0
    %1026 = vdwg.mxu0
    %1027 = vst [vmem:[#allocation2] sm:$0xff] %v1021
    %1028 = vst [vmem:[#allocation2 + $0x8] sm:$0xff] %v1023
    // Predicated region
    $region14: #{tpu_custom_call.1} parent=1 // pred_check
      _
    $region15: #{tpu_custom_call.1} parent=1 // pred_check_branch
      %1030 = sbr.rel (0) target = $region17
    $region16: #{tpu_custom_call.1} parent=1 // pred_region
      %s1032 = ssub.s32 256, 256
      %1033 = vsyncadd [#allocation3], %s1032
      %s1035 = sshll.u32 [#allocation2], 4
      %s1036 = int_to_ptr.vmem [resolvable:$true] %s1035
      %1038 = dma.vmem_to_hbm [thread:$0]  %s1036, 256, %s3, [#allocation3]
    $region17: #{tpu_custom_call.1} parent=1 // pred_fallthru
      _
    // Predicated region
    $region18: #{tpu_custom_call.1} parent=1 // pred_check
      _
    $region19: #{tpu_custom_call.1} parent=1 // pred_check_branch
      %1040 = sbr.rel (0) target = $region21
    $region20: #{tpu_custom_call.1} parent=1 // pred_region
      %1041 = dma.done [#allocation3], 256
    $region21: #{tpu_custom_call.1} parent=1 // pred_fallthru
      _
    %1042 = vsyncpa [#allocation3], 1

</llo_original>
